<compile_context>
chip_gen: v7x
topology: tpu7x:2x2x1
jax: 0.10.0
libtpu: 0.0.40
codegen_flags: <defaults>
</compile_context>

<pallas_src>
import jax
import jax.numpy as jnp
from jax.experimental import pallas as pl
from jax.experimental.pallas import tpu as pltpu

EPS = 1e-5  # nn.BatchNorm3d default eps


def _round_down_mult(x, m):
    return max((x // m) * m, m)


def tconv_layer(x, weight, bias, gamma, beta, *, tile_target=16384):
    """x: (N, C_in, D, H, W); weight: (C_in, C_out, 2, 2, 2). Returns NCDHW f32."""
    del bias  # per-channel constant cancels exactly under train-mode BatchNorm

    N, Cin, D, H, W = x.shape
    Cout = weight.shape[1]
    DHW = D * H * W
    M = N * DHW
    R = 8 * Cout  # one weight row per (channel, tap)

    # Native layout, free reshape: (N, C_in, D*H*W).  No transpose, no pad.
    x3 = x.reshape(N, Cin, DHW).astype(jnp.float32)

    # Lane tile along DHW: full extent if small, else a multiple of 128.
    if DHW <= tile_target:
        tile = DHW
    else:
        tile = _round_down_mult(tile_target, 128)
    T = pl.cdiv(DHW, tile)
    ragged = (DHW % tile) != 0

    # ------------------------------------------------------------------ #
    # Pass 1: Sxx = sum_m x x^T  and  Sx = sum_m x   (reads only x).      #
    # ------------------------------------------------------------------ #
    def stats_kernel(x_ref, sxx_ref, sx_ref):
        @pl.when((pl.program_id(0) == 0) & (pl.program_id(1) == 0))
        def _init():
            sxx_ref[...] = jnp.zeros_like(sxx_ref)
            sx_ref[...] = jnp.zeros_like(sx_ref)

        xb = x_ref[...]                                     # (Cin, tile)
        if ragged:
            # Mask the garbage columns of an out-of-bounds last tile.
            col = jax.lax.broadcasted_iota(jnp.int32, xb.shape, 1)
            col = col + pl.program_id(1) * tile
            xb = jnp.where(col < DHW, xb, 0.0)
        sxx_ref[...] += jax.lax.dot_general(
            xb, xb, (((1,), (1,)), ((), ())),
            preferred_element_type=jnp.float32)
        sx_ref[...] += jnp.sum(xb, axis=1, keepdims=True)

    sxx, sx = pl.pallas_call(
        stats_kernel,
        out_shape=(jax.ShapeDtypeStruct((Cin, Cin), jnp.float32),
                   jax.ShapeDtypeStruct((Cin, 1), jnp.float32)),
        grid_spec=pltpu.PrefetchScalarGridSpec(
            num_scalar_prefetch=0,
            grid=(N, T),
            in_specs=[pl.BlockSpec((pl.Squeezed(), Cin, tile),
                                   lambda n, t: (n, 0, t))],
            out_specs=(pl.BlockSpec((Cin, Cin), lambda n, t: (0, 0)),
                       pl.BlockSpec((Cin, 1), lambda n, t: (0, 0))),
        ),
        compiler_params=pltpu.CompilerParams(
            dimension_semantics=("arbitrary", "arbitrary")),
    )(x3)
    sx = sx[:, 0]

    # ------------------------------------------------------------------ #
    # Analytic per-channel BN statistics (tiny, O(C_out * C_in^2)).       #
    # Row order is channel-major: row = c*8 + ((kd*2+kh)*2+kw).           #
    # ------------------------------------------------------------------ #
    w_all = jnp.transpose(weight, (1, 2, 3, 4, 0)).reshape(R, Cin).astype(jnp.float32)
    n_elem = jnp.float32(8 * M)
    sum_row = w_all @ sx                                     # (R,)
    sumsq_row = jnp.einsum("ri,ij,rj->r", w_all, sxx, w_all)  # (R,)
    mean_c = sum_row.reshape(Cout, 8).sum(axis=1) / n_elem
    var_c = sumsq_row.reshape(Cout, 8).sum(axis=1) / n_elem - mean_c * mean_c
    # TODO(synk): mean-shifted / compensated accumulation would be more robust than
    # the clamped E[y^2]-E[y]^2 form for strongly non-centered activations.
    var_c = jnp.maximum(var_c, 0.0)
    scale_c = gamma.astype(jnp.float32) * jax.lax.rsqrt(var_c + EPS)
    shift_c = beta.astype(jnp.float32) - mean_c * scale_c

    # Fold the BN scale into the weights; kernel body is then relu(Wx + shift).
    w_scaled = w_all * jnp.repeat(scale_c, 8)[:, None]       # (R, Cin)
    shift_row = jnp.repeat(shift_c, 8).reshape(R, 1)         # (R, 1)

    # ------------------------------------------------------------------ #
    # Pass 2: fused deconv matmul + shift + ReLU, lane-dense over DHW.    #
    # ------------------------------------------------------------------ #
    def deconv_kernel(w_ref, b_ref, x_ref, o_ref):
        y = jnp.dot(w_ref[...], x_ref[...],                  # (R, tile)
                    preferred_element_type=jnp.float32)
        o_ref[...] = jnp.maximum(y + b_ref[...], 0.0)

    # Double-buffered working set (x tile + out tile), with 2x headroom,
    # clamped to stay inside every generation's scoped-VMEM budget.
    buf_bytes = 2 * (Cin + R) * tile * 4
    vmem_limit = int(min(48 << 20, max(2 * buf_bytes, 16 << 20)))

    out = pl.pallas_call(
        deconv_kernel,
        out_shape=jax.ShapeDtypeStruct((N, R, DHW), jnp.float32),
        grid_spec=pltpu.PrefetchScalarGridSpec(
            num_scalar_prefetch=0,
            grid=(N, T),
            in_specs=[
                pl.BlockSpec((R, Cin), lambda n, t: (0, 0)),     # scaled W (resident)
                pl.BlockSpec((R, 1), lambda n, t: (0, 0)),       # shift (resident)
                pl.BlockSpec((pl.Squeezed(), Cin, tile),
                             lambda n, t: (n, 0, t)),            # x tile
            ],
            out_specs=pl.BlockSpec((pl.Squeezed(), R, tile),
                                   lambda n, t: (n, 0, t)),
        ),
        compiler_params=pltpu.CompilerParams(
            dimension_semantics=("parallel", "parallel"),
            vmem_limit_bytes=vmem_limit),
    )(w_scaled, shift_row, x3)

    # TODO(synk): wrapper-side tap -> NCDHW scatter (see header note); drop it if the
    # consumer can take the tap-major layout directly.
    y = out.reshape(N, Cout, 2, 2, 2, D, H, W)               # (n,c,kd,kh,kw,d,h,w)
    y = jnp.transpose(y, (0, 1, 5, 2, 6, 3, 7, 4))           # (n,c,d,kd,h,kh,w,kw)
    return y.reshape(N, Cout, 2 * D, 2 * H, 2 * W)


def reference(x, weight, bias, gamma, beta):
    """Pure-JAX reference of the same forward pass (keeps the bias to verify it cancels)."""
    N, Cin, D, H, W = x.shape
    Cout = weight.shape[1]
    y = jnp.einsum("nidhw,ioabc->nodahbwc", x.astype(jnp.float32),
                   weight.astype(jnp.float32))
    y = y.reshape(N, Cout, 2 * D, 2 * H, 2 * W)
    y = y + bias[None, :, None, None, None]
    mu = y.mean(axis=(0, 2, 3, 4), keepdims=True)
    var = ((y - mu) ** 2).mean(axis=(0, 2, 3, 4), keepdims=True)
    y = (y - mu) * jax.lax.rsqrt(var + EPS)
    y = y * gamma[None, :, None, None, None] + beta[None, :, None, None, None]
    return jnp.maximum(y, 0.0)


if __name__ == "__main__":
    # Small shapes consistent with the module: TconvLayer(in_ch=4, out_ch=8)
    N, Cin, Cout, D, H, W = 2, 4, 8, 4, 4, 4

    key = jax.random.PRNGKey(0)
    kx, kw, kb, kg, kbe = jax.random.split(key, 5)

    x = jax.random.normal(kx, (N, Cin, D, H, W), dtype=jnp.float32)

    # Deterministic parameter init (ConvTranspose3d weight: (in_ch, out_ch, 2, 2, 2))
    fan = Cin * 2 * 2 * 2
    bound = 1.0 / jnp.sqrt(jnp.float32(fan))
    weight = jax.random.uniform(kw, (Cin, Cout, 2, 2, 2), jnp.float32, -bound, bound)
    bias = jax.random.uniform(kb, (Cout,), jnp.float32, -bound, bound)
    gamma = jax.random.uniform(kg, (Cout,), jnp.float32, 0.5, 1.5)
    beta = 0.1 * jax.random.normal(kbe, (Cout,), dtype=jnp.float32)

    out = tconv_layer(x, weight, bias, gamma, beta)
    out = jax.block_until_ready(out)

    ref = jax.block_until_ready(reference(x, weight, bias, gamma, beta))
    assert out.shape == (N, Cout, 2 * D, 2 * H, 2 * W), out.shape
    assert jnp.allclose(out, ref, atol=1e-3, rtol=1e-3), (
        float(jnp.max(jnp.abs(out - ref)))
    )

    print("KERNEL_OK")
</pallas_src>

<mosaic_0001>
module attributes {stable_mosaic.version = 11 : i64} {
  func.func @stats_kernel(%arg0: i32, %arg1: i32, %arg2: memref<1x4x64xf32, #tpu.memory_space<vmem>>, %arg3: memref<4x4xf32, #tpu.memory_space<vmem>>, %arg4: memref<4x1xf32, #tpu.memory_space<vmem>>) attributes {dimension_semantics = [#tpu.dimension_semantics<arbitrary>, #tpu.dimension_semantics<arbitrary>], iteration_bounds = array<i64: 2, 1>, scalar_prefetch = 0 : i64, scratch_operands = 0 : i64, tpu.core_type = #tpu.core_type<tc>, window_params = [{transform_indices = @transform_0, window_bounds = array<i64: 1, 4, 64>}, {pipeline_mode = #tpu.pipeline_mode<synchronous>, transform_indices = @transform_1, window_bounds = array<i64: 4, 4>}, {pipeline_mode = #tpu.pipeline_mode<synchronous>, transform_indices = @transform_2, window_bounds = array<i64: 4, 1>}]} {
    %c0_i32 = arith.constant 0 : i32
    %0 = arith.cmpi eq, %arg0, %c0_i32 : i32
    %c0_i32_0 = arith.constant 0 : i32
    %1 = arith.cmpi eq, %arg1, %c0_i32_0 : i32
    %2 = arith.andi %0, %1 : i1
    %3 = arith.extui %2 : i1 to i32
    %c0_i32_1 = arith.constant 0 : i32
    %4 = arith.cmpi ne, %3, %c0_i32_1 : i32
    scf.if %4 {
      %cst_13 = arith.constant 0.000000e+00 : f32
      %16 = vector.broadcast %cst_13 : f32 to vector<4x4xf32>
      %c0_14 = arith.constant 0 : index
      %c0_15 = arith.constant 0 : index
      %17 = vector.load %arg3[%c0_14, %c0_15] : memref<4x4xf32, #tpu.memory_space<vmem>>, vector<4x4xf32>
      tpu.vector_store %arg3[%c0_14, %c0_15], %16 {strides = array<i32>} : memref<4x4xf32, #tpu.memory_space<vmem>>, vector<4x4xf32>,
      %cst_16 = arith.constant 0.000000e+00 : f32
      %18 = vector.broadcast %cst_16 : f32 to vector<4x1xf32>
      %c0_17 = arith.constant 0 : index
      %c0_18 = arith.constant 0 : index
      %19 = vector.load %arg4[%c0_17, %c0_18] : memref<4x1xf32, #tpu.memory_space<vmem>>, vector<4x1xf32>
      tpu.vector_store %arg4[%c0_17, %c0_18], %18 {strides = array<i32>} : memref<4x1xf32, #tpu.memory_space<vmem>>, vector<4x1xf32>,
    } else {
    }
    %c0 = arith.constant 0 : index
    %c0_2 = arith.constant 0 : index
    %c0_3 = arith.constant 0 : index
    %5 = vector.load %arg2[%c0, %c0_2, %c0_3] : memref<1x4x64xf32, #tpu.memory_space<vmem>>, vector<1x4x64xf32>
    %6 = vector.shape_cast %5 : vector<1x4x64xf32> to vector<4x64xf32>
    %c0_4 = arith.constant 0 : index
    %c0_5 = arith.constant 0 : index
    %7 = vector.load %arg3[%c0_4, %c0_5] : memref<4x4xf32, #tpu.memory_space<vmem>>, vector<4x4xf32>
    %cst = arith.constant dense<0.000000e+00> : vector<4x4xf32>
    %8 = tpu.matmul %6, %6, %cst {dimension_numbers = #tpu.dot_dimension_numbers<[1], [1], [0], [0], [0, 0, 1, 0], [], []>} : vector<4x64xf32>, vector<4x64xf32>, vector<4x4xf32> -> vector<4x4xf32>
    %9 = arith.addf %7, %8 : vector<4x4xf32>
    %c0_6 = arith.constant 0 : index
    %c0_7 = arith.constant 0 : index
    %10 = vector.load %arg3[%c0_6, %c0_7] : memref<4x4xf32, #tpu.memory_space<vmem>>, vector<4x4xf32>
    tpu.vector_store %arg3[%c0_6, %c0_7], %9 {strides = array<i32>} : memref<4x4xf32, #tpu.memory_space<vmem>>, vector<4x4xf32>,
    %c0_8 = arith.constant 0 : index
    %c0_9 = arith.constant 0 : index
    %11 = vector.load %arg4[%c0_8, %c0_9] : memref<4x1xf32, #tpu.memory_space<vmem>>, vector<4x1xf32>
    %cst_10 = arith.constant dense<0.000000e+00> : vector<4xf32>
    %12 = vector.multi_reduction <add>, %6, %cst_10 [1] : vector<4x64xf32> to vector<4xf32>
    %13 = vector.shape_cast %12 : vector<4xf32> to vector<4x1xf32>
    %14 = arith.addf %11, %13 : vector<4x1xf32>
    %c0_11 = arith.constant 0 : index
    %c0_12 = arith.constant 0 : index
    %15 = vector.load %arg4[%c0_11, %c0_12] : memref<4x1xf32, #tpu.memory_space<vmem>>, vector<4x1xf32>
    tpu.vector_store %arg4[%c0_11, %c0_12], %14 {strides = array<i32>} : memref<4x1xf32, #tpu.memory_space<vmem>>, vector<4x1xf32>,
    return
  }
  func.func @transform_0(%arg0: i32, %arg1: i32) -> (i32, i32, i32) {
    %c0_i32 = arith.constant 0 : i32
    %c0_i32_0 = arith.constant 0 : i32
    return %arg0, %c0_i32, %arg1 : i32, i32, i32
  }
  func.func @transform_1(%arg0: i32, %arg1: i32) -> (i32, i32) {
    %c0_i32 = arith.constant 0 : i32
    %c0_i32_0 = arith.constant 0 : i32
    %c0_i32_1 = arith.constant 0 : i32
    return %c0_i32, %c0_i32_0 : i32, i32
  }
  func.func @transform_2(%arg0: i32, %arg1: i32) -> (i32, i32) {
    %c0_i32 = arith.constant 0 : i32
    %c0_i32_0 = arith.constant 0 : i32
    %c0_i32_1 = arith.constant 0 : i32
    return %c0_i32, %c0_i32_0 : i32, i32
  }
}

</mosaic_0001>

<llo_original>
// kernel: tpu_custom_call.1
$region0: #{tpu_custom_call.1}
  #allocation0 [shape = 'u32[]', space=smem, size = 0x4, offset = 0x4, fixed_abs, tag = 'smem constant byte address 0x4 - core index']
  #allocation1 [shape = 'u32[144,128]{1,0:T(1,128)}', space=vmem, size = 0x12000, scoped, tag = 'internal scratch']
  %s0 = inlined_call_operand.hbm [shape: f32[2,4,64], index: 0, kind: input, shape index: {}]
  %s1 = inlined_call_operand.hbm [shape: f32[4,4], index: 1, kind: output, shape index: {0}]
  %s2 = inlined_call_operand.vmem [shape: f32[4,1], index: 2, kind: output, shape index: {1}]
  %3 = xla_tuple %s1, %s2
  %s4 = sld [smem:[#allocation0]]
  $region53: #{tpu_custom_call.1} parent=0
    _
  %s6 = ssub.s32 1, %s4
  %s7 = scalar_select 0, %s6, %s4
  $region1: #{tpu_custom_call.1} parent=0
    #allocation2 [shape = 'u8[4096]{0}', space=vmem, size = 0x1000, scoped, tag = 'input window, operand 0']
    #allocation3 [shape = 's32[2]{0}', space=sflag, size = 0x8, scoped, tag = 'scoped memory for tpu_custom_call.1']
    #allocation4 [shape = 's32[2]{0}', space=sflag, size = 0x8, scoped, tag = 'scoped memory for tpu_custom_call.1']
    #allocation5 [shape = 'u8[2048]{0}', space=vmem, size = 0x800, scoped, tag = 'output window, operand 0, single buffered']
    %8 = vsyncpa [#allocation3], 0
    %s9 = scalar_lea.sflag [#allocation3], 1
    %10 = vsyncpa %s9, 0
    %11 = vsyncpa [#allocation4], 0
    loop: start=0, step=1, limit=4
    $region2: #{tpu_custom_call.1} parent=1 // loop_pre_header
      _
    $region3: #{tpu_custom_call.1} parent=1 // loop_header
      %s13 = sphi 0, %s17
      %p14 = scmp.ge.s32.totalorder %s13, 4
      %s20 = sphi 0, %s32
      %s21 = sphi 0, %s28
      %s22 = sphi 0, %s20
      %s23 = sphi 0, %s21
      %s24 = sphi 0, %s22
      %s25 = sphi 0, %s23
      %s37 = sphi 0, %s39
      %s40 = sphi 0, %s37
      %s41 = sphi 0, %s40
      %s57 = sphi 0, %s41
      %s61 = sphi 0, %s61
      %s63 = sphi 0, %s61
      %s64 = sphi 0, %s63
      %s78 = sphi 0, %s64
      %s82 = sphi 0, %s82
      %s84 = sphi 0, %s82
      %s85 = sphi 0, %s84
      %s99 = sphi 0, %s85
    $region4: #{tpu_custom_call.1} parent=1 // loop_header_branch
      %16 = sbr.rel (%p14) target = $region8
    $region5: #{tpu_custom_call.1} parent=1 // loop_body
      %s18 = ssub.s32 %s13, 1
      %s19 = ssub.s32 %s13, 2
      %s26 = sadd.s32 1, %s21
      %p27 = scmp.ge.s32.totalorder %s26, 1
      %s28 = scalar_select %p27, 0, %s26
      %s29 = sadd.s32 1, %s20
      %s30 = scalar_select %p27, %s29, %s20
      %p31 = scmp.ge.s32.totalorder %s30, 2
      %s32 = scalar_select %p31, 0, %s30
      %s33 = ssub.s32 %s20, %s32
      %s34 = ssub.s32 %s21, %s28
      %s35 = sor.u32 %s33, %s34
      %p36 = scmp.eq.s32.totalorder %s35, 0
      %s38 = sadd.s32 %s37, 1
      %s39 = scalar_select %p36, %s37, %s38
      %p42 = pneg %p36
      %p43 = scmp.eq.s32.totalorder %s13, 1
      %p44 = por %p42, %p43
      %p45 = scmp.ne.s32.totalorder %s37, %s40
      %p46 = scmp.eq.s32.totalorder %s13, 0
      %p47 = por %p45, %p46
      %p48 = scmp.ne.s32.totalorder %s37, %s40
      %p49 = scmp.eq.s32.totalorder %s18, 1
      %p50 = por %p48, %p49
      %p51 = scmp.ne.s32.totalorder %s40, %s41
      %p52 = scmp.eq.s32.totalorder %s18, 0
      %p53 = por %p51, %p52
      %p54 = scmp.ne.s32.totalorder %s40, %s41
      %p55 = scmp.eq.s32.totalorder %s19, 1
      %p56 = por %p54, %p55
      %p58 = scmp.ne.s32.totalorder %s41, %s57
      %p59 = scmp.eq.s32.totalorder %s19, 0
      %p60 = por %p58, %p59
      %s62 = sadd.s32 %s61, 1
      %p65 = scmp.eq.s32.totalorder %s13, 1
      %p66 = scmp.ne.s32.totalorder %s61, %s63
      %p67 = scmp.eq.s32.totalorder %s13, 0
      %p68 = por %p66, %p67
      %p69 = scmp.ne.s32.totalorder %s61, %s63
      %p70 = scmp.eq.s32.totalorder %s18, 1
      %p71 = por %p69, %p70
      %p72 = scmp.ne.s32.totalorder %s63, %s64
      %p73 = scmp.eq.s32.totalorder %s18, 0
      %p74 = por %p72, %p73
      %p75 = scmp.ne.s32.totalorder %s63, %s64
      %p76 = scmp.eq.s32.totalorder %s19, 1
      %p77 = por %p75, %p76
      %p79 = scmp.ne.s32.totalorder %s64, %s78
      %p80 = scmp.eq.s32.totalorder %s19, 0
      %p81 = por %p79, %p80
      %s83 = sadd.s32 %s82, 1
      %p86 = scmp.eq.s32.totalorder %s13, 1
      %p87 = scmp.ne.s32.totalorder %s82, %s84
      %p88 = scmp.eq.s32.totalorder %s13, 0
      %p89 = por %p87, %p88
      %p90 = scmp.ne.s32.totalorder %s82, %s84
      %p91 = scmp.eq.s32.totalorder %s18, 1
      %p92 = por %p90, %p91
      %p93 = scmp.ne.s32.totalorder %s84, %s85
      %p94 = scmp.eq.s32.totalorder %s18, 0
      %p95 = por %p93, %p94
      %p96 = scmp.ne.s32.totalorder %s84, %s85
      %p97 = scmp.eq.s32.totalorder %s19, 1
      %p98 = por %p96, %p97
      %p100 = scmp.ne.s32.totalorder %s85, %s99
      %p101 = scmp.eq.s32.totalorder %s19, 0
      %p102 = por %p100, %p101
      %p103 = scmp.le.s32.totalorder 1, %s13
      %p104 = scmp.lt.s32.totalorder %s13, 3
      %p105 = pnand %p103, %p104
      %p106 = pneg %p105
      // Predicated region
      $region9: #{tpu_custom_call.1} parent=5 // pred_check
        _
      $region10: #{tpu_custom_call.1} parent=5 // pred_check_branch
        %108 = sbr.rel (%p105) target = $region12
      $region11: #{tpu_custom_call.1} parent=5 // pred_region
        %s109 = ssub.s32 %s13, 1
      $region12: #{tpu_custom_call.1} parent=5 // pred_fallthru
        _
      %p110 = scmp.lt.s32.totalorder %s13, 2
      // Predicated region
      $region13: #{tpu_custom_call.1} parent=5 // pred_check
        %p111 = pneg %p110
      $region14: #{tpu_custom_call.1} parent=5 // pred_check_branch
        %113 = sbr.rel (%p111) target = $region16
      $region15: #{tpu_custom_call.1} parent=5 // pred_region
        // Predicated region
        $region17: #{tpu_custom_call.1} parent=15 // pred_check
          %p114 = pneg %p47
        $region18: #{tpu_custom_call.1} parent=15 // pred_check_branch
          %116 = sbr.rel (%p114) target = $region20
        $region19: #{tpu_custom_call.1} parent=15 // pred_region
          %s117 = sand.u32 %s37, 1
          %s118 = scalar_lea.sflag [#allocation3], %s117
          %s119 = sand.u32 %s37, 1
          %s120 = smul.addr %s119, 4
          %s121 = scalar_lea.vmem [#allocation2], %s120
          %s123 = ssub.s32 64, 64
          %124 = vsyncadd %s118, %s123
          %s125 = sadd.s32 %s21, %s20
          %s126 = smul.addr %s125, 64
          %s127 = scalar_lea.hbm %s0, %s126
          %s129 = sshll.u32 %s121, 4
          %s130 = int_to_ptr.vmem [resolvable:$true] %s129
          %132 = dma.hbm_to_vmem [thread:$0]  %s127, 64, %s130, %s118
        $region20: #{tpu_custom_call.1} parent=15 // pred_fallthru
          _
      $region16: #{tpu_custom_call.1} parent=5 // pred_fallthru
        _
      %p133 = scmp.le.s32.totalorder 1, %s13
      %p134 = scmp.lt.s32.totalorder %s13, 3
      %p135 = pnand %p133, %p134
      %p136 = pneg %p135
      // Predicated region
      $region21: #{tpu_custom_call.1} parent=5 // pred_check
        _
      $region22: #{tpu_custom_call.1} parent=5 // pred_check_branch
        %138 = sbr.rel (%p135) target = $region24
      $region23: #{tpu_custom_call.1} parent=5 // pred_region
        %s139 = ssub.s32 %s13, 1
        %s140 = sand.u32 %s40, 1
        %s141 = scalar_lea.sflag [#allocation3], %s140
        %s142 = sand.u32 %s40, 1
        %s143 = smul.addr %s142, 4
        %s144 = scalar_lea.vmem [#allocation2], %s143
        // Predicated region
        $region25: #{tpu_custom_call.1} parent=23 // pred_check
          %p145 = pneg %p53
        $region26: #{tpu_custom_call.1} parent=23 // pred_check_branch
          %147 = sbr.rel (%p145) target = $region28
        $region27: #{tpu_custom_call.1} parent=23 // pred_region
          %148 = dma.done %s141, 64
        $region28: #{tpu_custom_call.1} parent=23 // pred_fallthru
          _
        %s149 = sand.u32 %s40, 1
        %s150 = scalar_lea.sflag [#allocation3], %s149
        %s151 = sand.u32 %s40, 1
        %s152 = smul.addr %s151, 4
        %s153 = scalar_lea.vmem [#allocation2], %s152
        %p154 = pneg %p53
        %p155 = pneg %p50
        %p156 = pneg %p74
        %p157 = pneg %p71
        %p158 = pneg %p95
        %p159 = pneg %p92
        %p160 = scmp.eq.s32.totalorder %s22, 0
        %p161 = scmp.eq.s32.totalorder %s23, 0
        %p162 = pnand %p160, %p161
        %p163 = pneg %p162
        // Predicated region
        $region29: #{tpu_custom_call.1} parent=23 // pred_check
          _
        $region30: #{tpu_custom_call.1} parent=23 // pred_check_branch
          %165 = sbr.rel (%p162) target = $region32
        $region31: #{tpu_custom_call.1} parent=23 // pred_region
          %vm166 = vcmask 27648
          %167 = vst.msk [vmem:[#allocation5] sm:$0xf] %vm166, 0.0
          %vm168 = vcmask 3072
          %169 = vst.msk [vmem:[%s2] sm:$0xf] %vm168, 0.0
        $region32: #{tpu_custom_call.1} parent=23 // pred_fallthru
          _
        %v170 = vld [vmem:[%s144] sm:$0xf]
        %v171 = vld [vmem:[#allocation5] sm:$0xf]
        %vm172 = vcmask 523264
        %v174 = vsel %vm172, %v170, 0
        %176 = vmatprep.subr.mxu0 0.0
        %177 = vmatpush1.xpose.msra.mxu0 %v174
        %178 = vmatprep.subr.mxu0 0.0
        %179 = vmatpush1.xpose.msra.mxu0 0.0
        %180 = vmatprep.subr.mxu0 0.0
        %181 = vmatpush1.xpose.msra.mxu0 0.0
        %182 = vmatprep.subr.mxu0 0.0
        %183 = vmatpush1.xpose.msra.mxu0 0.0
        %184 = vmatprep.subr.mxu0 0.0
        %185 = vmatpush1.xpose.msra.mxu0 0.0
        %186 = vmatprep.subr.mxu0 0.0
        %187 = vmatpush1.xpose.msra.mxu0 0.0
        %188 = vmatprep.subr.mxu0 0.0
        %189 = vmatpush1.xpose.msra.mxu0 0.0
        %190 = vmatprep.subr.mxu0 0.0
        %191 = vmatpush1.xpose.msra.mxu0 0.0
        %192 = vmatprep.subr.mxu0 0.0
        %193 = vmatpush1.xpose.msra.mxu0 0.0
        %194 = vmatprep.subr.mxu0 0.0
        %195 = vmatpush1.xpose.msra.mxu0 0.0
        %196 = vmatprep.subr.mxu0 0.0
        %197 = vmatpush1.xpose.msra.mxu0 0.0
        %198 = vmatprep.subr.mxu0 0.0
        %199 = vmatpush1.xpose.msra.mxu0 0.0
        %200 = vmatprep.subr.mxu0 0.0
        %201 = vmatpush1.xpose.msra.mxu0 0.0
        %202 = vmatprep.subr.mxu0 0.0
        %203 = vmatpush1.xpose.msra.mxu0 0.0
        %204 = vmatprep.subr.mxu0 0.0
        %205 = vmatpush1.xpose.msra.mxu0 0.0
        %206 = vmatprep.subr.mxu0 0.0
        %207 = vmatpush1.xpose.msra.mxu0 0.0
        %208 = vmatprep.subr.mxu0 0.0
        %209 = vmatpush1.xpose.msra.mxu0 0.0
        %210 = vmatprep.subr.mxu0 0.0
        %211 = vmatpush1.xpose.msra.mxu0 0.0
        %212 = vmatprep.subr.mxu0 0.0
        %213 = vmatpush1.xpose.msra.mxu0 0.0
        %214 = vmatprep.subr.mxu0 0.0
        %215 = vmatpush1.xpose.msra.mxu0 0.0
        %216 = vmatprep.subr.mxu0 0.0
        %217 = vmatpush1.xpose.msra.mxu0 0.0
        %218 = vmatprep.subr.mxu0 0.0
        %219 = vmatpush1.xpose.msra.mxu0 0.0
        %220 = vmatprep.subr.mxu0 0.0
        %221 = vmatpush1.xpose.msra.mxu0 0.0
        %222 = vmatprep.subr.mxu0 0.0
        %223 = vmatpush1.xpose.msra.mxu0 0.0
        %224 = vmatprep.subr.mxu0 0.0
        %225 = vmatpush1.xpose.msra.mxu0 0.0
        %226 = vmatprep.subr.mxu0 0.0
        %227 = vmatpush1.xpose.msra.mxu0 0.0
        %228 = vmatprep.subr.mxu0 0.0
        %229 = vmatpush1.xpose.msra.mxu0 0.0
        %230 = vmatprep.subr.mxu0 0.0
        %231 = vmatpush1.xpose.msra.mxu0 0.0
        %232 = vmatprep.subr.mxu0 0.0
        %233 = vmatpush1.xpose.msra.mxu0 0.0
        %234 = vmatprep.subr.mxu0 0.0
        %235 = vmatpush1.xpose.msra.mxu0 0.0
        %236 = vmatprep.subr.mxu0 0.0
        %237 = vmatpush1.xpose.msra.mxu0 0.0
        %238 = vmatprep.subr.mxu0 0.0
        %239 = vmatpush1.xpose.msra.mxu0 0.0
        %240 = vmatprep.mubr.f32.mxu0 0.0
        %241 = vmatmul.mubr.f32.gmra.mrb[0].mxu0 %v174
        %v242 = vpop.f32.mrb[0].mxu0
        %v243 = vadd.f32 0.0, %v242
        %v244 = vpop.f32.mrb[0].mxu0
        %245 = vdwg.mxu0
        %v246 = vadd.f32 %v171, %v243
        %vm247 = vcmask 27648
        %248 = vst.msk [vmem:[#allocation5] sm:$0xf] %vm247, %v246
        %v249 = vld [vmem:[%s2] sm:$0xf]
        %vm250 = vcmask 519168
        %v251 = vsel %vm250, %v170, 0.0
        %252 = vadd.xlane.f32.xlu0 %v251
        %v253 = vpop.xlane.xlu0 %252
        %v254 = vadd.f32 %v249, %v253
        %vm255 = vcmask 3072
        %256 = vst.msk [vmem:[%s2] sm:$0xf] %vm255, %v254
        // Predicated region
        $region33: #{tpu_custom_call.1} parent=23 // pred_check
          %p257 = pneg %p71
        $region34: #{tpu_custom_call.1} parent=23 // pred_check_branch
          %259 = sbr.rel (%p257) target = $region36
        $region35: #{tpu_custom_call.1} parent=23 // pred_region
          %s261 = ssub.s32 64, 64
          %262 = vsyncadd [#allocation4], %s261
          %s264 = sshll.u32 [#allocation5], 4
          %s265 = int_to_ptr.vmem [resolvable:$true] %s264
          %267 = dma.vmem_to_hbm [thread:$0]  %s265, 64, %s1, [#allocation4]
        $region36: #{tpu_custom_call.1} parent=23 // pred_fallthru
          _
        // Predicated region
        $region37: #{tpu_custom_call.1} parent=23 // pred_check
          %p268 = pneg %p92
        $region38: #{tpu_custom_call.1} parent=23 // pred_check_branch
          %270 = sbr.rel (%p268) target = $region40
        $region39: #{tpu_custom_call.1} parent=23 // pred_region
          _
        $region40: #{tpu_custom_call.1} parent=23 // pred_fallthru
          _
        // Predicated region
        $region41: #{tpu_custom_call.1} parent=23 // pred_check
          %p271 = pneg %p71
        $region42: #{tpu_custom_call.1} parent=23 // pred_check_branch
          %273 = sbr.rel (%p271) target = $region44
        $region43: #{tpu_custom_call.1} parent=23 // pred_region
          %274 = dma.done [#allocation4], 64
        $region44: #{tpu_custom_call.1} parent=23 // pred_fallthru
          _
        // Predicated region
        $region45: #{tpu_custom_call.1} parent=23 // pred_check
          %p275 = pneg %p92
        $region46: #{tpu_custom_call.1} parent=23 // pred_check_branch
          %277 = sbr.rel (%p275) target = $region48
        $region47: #{tpu_custom_call.1} parent=23 // pred_region
          _
        $region48: #{tpu_custom_call.1} parent=23 // pred_fallthru
          _
      $region24: #{tpu_custom_call.1} parent=5 // pred_fallthru
        _
      %p278 = scmp.le.s32.totalorder 2, %s13
      // Predicated region
      $region49: #{tpu_custom_call.1} parent=5 // pred_check
        %p279 = pneg %p278
      $region50: #{tpu_custom_call.1} parent=5 // pred_check_branch
        %281 = sbr.rel (%p279) target = $region52
      $region51: #{tpu_custom_call.1} parent=5 // pred_region
        %s282 = ssub.s32 %s13, 2
      $region52: #{tpu_custom_call.1} parent=5 // pred_fallthru
        _
    $region6: #{tpu_custom_call.1} parent=1 // loop_footer
      %s17 = sadd.s32 1, %s13
    $region7: #{tpu_custom_call.1} parent=1 // loop_footer_branch
      %12 = sbr.rel target = $region3
    $region8: #{tpu_custom_call.1} parent=1 // loop_exit
      _
    %283 = vsyncpa [#allocation3], 1
    %s284 = scalar_lea.sflag [#allocation3], 1
    %285 = vsyncpa %s284, 1
    %286 = vsyncpa [#allocation4], 1
    %s287 = scalar_lea.sflag [#allocation4], 1
    %288 = vsyncpa %s287, 1

</llo_original>
